<compile_context>
chip_gen: v6e
topology: v6e:2x2x1
jax: 0.10.0
libtpu: 0.0.40
codegen_flags: <defaults>
</compile_context>

<pallas_src>
import functools
import math

import jax
import jax.numpy as jnp
from jax import lax
from jax.experimental import pallas as pl
from jax.experimental.pallas import tpu as pltpu


def _get_padding(kernel_size, stride=1, dilation=1, **_):
    return (stride - 1 + dilation * (kernel_size - 1)) // 2


def _round_up(x, m):
    return -(-x // m) * m


def _pick_padded_width(W, pad, row_tile):
    """Smallest padded width >= W + 2*pad with (row_tile * Wpp) % 128 == 0."""
    base = W + 2 * pad
    step = 128 // math.gcd(row_tile, 128)
    return _round_up(base, step)


def _choose_row_tile(H, W, pad, Cin_p, es_in, KH, KW, use_im2col,
                     target_bytes=4 << 20):
    """Rows per spatial tile so the per-step VMEM working set stays ~target."""
    base_w = W + 2 * pad
    # rough number of per-row input copies resident per step
    copies = (KH * KW + 4) if use_im2col else 4
    th = max(1, target_bytes // max(1, Cin_p * base_w * es_in * copies))
    th = min(th, 64)                 # keep enough grid steps for pipelining
    th = min(th, _round_up(H, 8))    # do not cover far past the image
    if th >= 8:
        th = (th // 8) * 8           # multiple of 8 keeps width padding small
    th = max(th, KH)                 # halo (KH-1 rows) must fit in next tile
    return int(th)


def _conv_kernel(x_lo_ref, x_hi_ref, w_ref, b_ref, o_ref, slab_ref,
                 patch_ref=None, *, KH, KW, Cin_p, Wpp, TL, HALO_P, use_im2col):
    # x_lo_ref/x_hi_ref: (1, Cin_p, TL)  current / next row tile (flattened)
    # w_ref: (TCO, KH*KW*Cin_p)  [im2col]  or  (KH*KW, TCO, Cin_p)  [direct]
    # b_ref: (TCO, 1) f32
    # o_ref: (1, TCO, TL)
    # slab_ref: (Cin_p, TL + HALO_P) VMEM scratch
    # patch_ref: (KH*KW*Cin_p, TL) VMEM scratch (im2col path only)

    # Contiguous lane slab = [ current tile | halo from next tile ] so every
    # conv tap is a static lane slice (overlapping-rows trick).
    slab_ref[:, :TL] = x_lo_ref[0]
    if HALO_P:
        slab_ref[:, TL:] = x_hi_ref[0, :, :HALO_P]

    if use_im2col:
        # Small-Cin path: Cin_p is sublane-aligned, so every tap copy below is
        # a full-tile aligned store; then one fused MXU matmul, K=KH*KW*Cin_p.
        for kh in range(KH):
            for kw in range(KW):
                t = kh * KW + kw
                shift = kh * Wpp + kw
                patch_ref[t * Cin_p:(t + 1) * Cin_p, :] = \
                    slab_ref[:, shift:shift + TL]
        acc = jnp.dot(w_ref[...], patch_ref[...],
                      preferred_element_type=jnp.float32)
    else:
        # Large-Cin path: per-tap accumulating matmuls (K = Cin_p already
        # fills the MXU); no patch duplication, no vst-bound copy loop.
        acc = None
        for kh in range(KH):
            for kw in range(KW):
                t = kh * KW + kw
                shift = kh * Wpp + kw
                part = jnp.dot(w_ref[t], slab_ref[:, shift:shift + TL],
                               preferred_element_type=jnp.float32)
                acc = part if acc is None else acc + part

    o_ref[0] = (acc + b_ref[...]).astype(o_ref.dtype)
    # TODO(synk): norm_block / act_fn are None in the module defaults; if a
    # BatchNorm / activation were requested they would be fused here on `acc`.


def conv_forward(x_nchw, weight, bias, *, stride=1, dilation=1,
                 mxu_dtype=None, row_tile=None, conv_impl=None):
    """Equivalent of Conv(...).forward(x) with default norm/act (None)."""
    assert stride == 1 and dilation == 1, "default Conv config uses stride=1"
    N, Cin, H, W = x_nchw.shape
    Cout, Cin_w, KH, KW = weight.shape
    assert Cin == Cin_w
    assert KH % 2 == 1 and KW % 2 == 1, \
        "symmetric 'same' padding matches PyTorch only for odd kernel sizes"
    pad = _get_padding(KH, stride=stride, dilation=dilation)

    compute_dtype = jnp.dtype(mxu_dtype) if mxu_dtype is not None \
        else jnp.dtype(x_nchw.dtype)
    es_in = compute_dtype.itemsize
    es_out = jnp.dtype(x_nchw.dtype).itemsize

    # Channels padded to the sublane packing granularity (8 f32 / 16 bf16).
    sub = max(8, 32 // es_in)
    Cin_p = _round_up(Cin, sub)

    # Compute-path selection (overridable for testing).
    if conv_impl is None:
        use_im2col = Cin < 128
    else:
        use_im2col = (conv_impl == "im2col")

    # Spatial tiling geometry.
    TH = int(row_tile) if row_tile is not None else _choose_row_tile(
        H, W, pad, Cin_p, es_in, KH, KW, use_im2col)
    assert TH >= KH, "row tile must cover the (KH-1)-row halo"
    Wpp = _pick_padded_width(W, pad, TH)
    TL = TH * Wpp                              # lanes per spatial tile
    assert TL % 128 == 0
    halo = (KH - 1) * Wpp + (KW - 1)
    HALO_P = _round_up(halo, 128) if halo else 0
    assert HALO_P <= TL

    RT = -(-H // TH)                           # output row tiles
    HT = RT + 1                                # input row tiles (+1 halo src)
    Hpp = HT * TH

    # Cout tiling.
    TCO = Cout if Cout <= 256 else 256
    CO_pad = _round_up(Cout, TCO)
    CO_T = CO_pad // TCO

    # ---- wrapper-side prep: single pad (+ one-time cast), no transposes of x.
    xp = jnp.pad(x_nchw, ((0, 0), (0, Cin_p - Cin),
                          (pad, Hpp - H - pad), (pad, Wpp - W - pad)))
    if mxu_dtype is not None:
        xp = xp.astype(compute_dtype)          # cast once, outside the kernel
    xflat = xp.reshape(N, Cin_p, Hpp * Wpp)
    # TODO(synk): fold this pad and the final crop into the kernel to save an
    # extra HBM pass over the activations.

    wp = jnp.pad(weight, ((0, CO_pad - Cout), (0, Cin_p - Cin),
                          (0, 0), (0, 0))).astype(compute_dtype)
    if use_im2col:
        # (CO_pad, KH*KW*Cin_p), tap-major / channel-minor (matches patch).
        w_arr = jnp.transpose(wp, (0, 2, 3, 1)).reshape(CO_pad, KH * KW * Cin_p)
        w_spec = pl.BlockSpec((TCO, KH * KW * Cin_p), lambda n, co, r: (co, 0))
    else:
        # (KH*KW, CO_pad, Cin_p): w_arr[t] is the (Cout, Cin) slab of tap t.
        w_arr = jnp.transpose(wp, (2, 3, 0, 1)).reshape(KH * KW, CO_pad, Cin_p)
        w_spec = pl.BlockSpec((KH * KW, TCO, Cin_p), lambda n, co, r: (0, co, 0))
    b_arr = jnp.pad(bias, (0, CO_pad - Cout)).astype(jnp.float32).reshape(CO_pad, 1)

    scratch = [pltpu.VMEM((Cin_p, TL + HALO_P), compute_dtype)]
    if use_im2col:
        scratch.append(pltpu.VMEM((KH * KW * Cin_p, TL), compute_dtype))

    # Explicit VMEM budget for the chosen tiles (with headroom).
    w_tile_bytes = TCO * KH * KW * Cin_p * es_in
    vmem = (2 * 2 * Cin_p * TL * es_in          # x lo/hi, double-buffered
            + 2 * TCO * TL * es_out             # output tile, double-buffered
            + 2 * w_tile_bytes + 2 * TCO * 4    # weights + bias
            + Cin_p * (TL + HALO_P) * es_in     # slab scratch
            + 2 * TCO * TL * 4)                 # f32 accumulator temporaries
    if use_im2col:
        vmem += KH * KW * Cin_p * TL * es_in    # patch scratch
    vmem_limit = int(min(max(vmem * 3 // 2 + (2 << 20), 32 << 20), 56 << 20))

    kernel = functools.partial(
        _conv_kernel, KH=KH, KW=KW, Cin_p=Cin_p, Wpp=Wpp, TL=TL,
        HALO_P=HALO_P, use_im2col=use_im2col)

    out_wide = pl.pallas_call(
        kernel,
        out_shape=jax.ShapeDtypeStruct((N, CO_pad, RT * TL), x_nchw.dtype),
        grid_spec=pltpu.PrefetchScalarGridSpec(
            num_scalar_prefetch=0,
            grid=(N, CO_T, RT),
            in_specs=[
                # current row tile
                pl.BlockSpec((1, Cin_p, TL), lambda n, co, r: (n, 0, r)),
                # next row tile (halo source)
                pl.BlockSpec((1, Cin_p, TL), lambda n, co, r: (n, 0, r + 1)),
                w_spec,
                pl.BlockSpec((TCO, 1), lambda n, co, r: (co, 0)),
            ],
            out_specs=pl.BlockSpec((1, TCO, TL), lambda n, co, r: (n, co, r)),
            scratch_shapes=scratch,
        ),
        compiler_params=pltpu.CompilerParams(
            dimension_semantics=("parallel", "parallel", "parallel"),
            vmem_limit_bytes=vmem_limit),
    )(xflat, xflat, w_arr, b_arr)

    # Crop the wide lane-dense output back to (N, Cout, H, W); already NCHW.
    out = out_wide.reshape(N, CO_pad, RT * TH, Wpp)
    return out[:, :Cout, :H, :W]


if __name__ == "__main__":
    # Module config: Conv(in_channels=4, out_channels=8, kernel_size=3)
    N, Cin, Cout, H, W, K = 2, 4, 8, 16, 16, 3

    key = jax.random.PRNGKey(0)
    kx, kw, kb = jax.random.split(key, 3)
    x = jax.random.normal(kx, (N, Cin, H, W), dtype=jnp.float32)
    bound = 1.0 / (Cin * K * K) ** 0.5
    weight = jax.random.uniform(kw, (Cout, Cin, K, K), jnp.float32,
                                minval=-bound, maxval=bound)
    bias = jax.random.uniform(kb, (Cout,), jnp.float32,
                              minval=-bound, maxval=bound)

    # Reference (same semantics as nn.Conv2d with padding=1, bias=True).
    ref = lax.conv_general_dilated(
        x, weight, window_strides=(1, 1), padding=((1, 1), (1, 1)),
        dimension_numbers=("NCHW", "OIHW", "NCHW"),
        precision=lax.Precision.HIGHEST,
    ) + bias.reshape(1, Cout, 1, 1)

    # 1) default config: f32 operands, fused im2col path, auto tiling.
    out = jax.block_until_ready(conv_forward(x, weight, bias))
    assert out.shape == (N, Cout, H, W)
    assert jnp.allclose(out, ref, atol=1e-4, rtol=1e-4)

    # 2) forced spatial tiling (2 row tiles) -> exercises the halo path.
    out2 = jax.block_until_ready(conv_forward(x, weight, bias, row_tile=8))
    assert jnp.allclose(out2, ref, atol=1e-4, rtol=1e-4)

    # 3) per-tap accumulate path (the code path used for large Cin).
    out3 = jax.block_until_ready(
        conv_forward(x, weight, bias, row_tile=8, conv_impl="direct"))
    assert jnp.allclose(out3, ref, atol=1e-4, rtol=1e-4)

    # 4) bf16 MXU operands (recommended on v6e/v7x). Accumulation stays f32;
    #    only operand rounding -> loose tolerance.
    out4 = jax.block_until_ready(
        conv_forward(x, weight, bias, mxu_dtype=jnp.bfloat16))
    assert jnp.allclose(out4, ref, atol=5e-2, rtol=5e-2)

    print("KERNEL_OK")
</pallas_src>

<mosaic_0001>
module attributes {stable_mosaic.version = 11 : i64} {
  func.func @_conv_kernel(%arg0: i32, %arg1: i32, %arg2: i32, %arg3: memref<1x8x384xf32, #tpu.memory_space<vmem>>, %arg4: memref<1x8x384xf32, #tpu.memory_space<vmem>>, %arg5: memref<8x72xf32, #tpu.memory_space<vmem>>, %arg6: memref<8x1xf32, #tpu.memory_space<vmem>>, %arg7: memref<1x8x384xf32, #tpu.memory_space<vmem>>, %arg8: memref<8x512xf32, #tpu.memory_space<vmem>>, %arg9: memref<72x384xf32, #tpu.memory_space<vmem>>) attributes {dimension_semantics = [#tpu.dimension_semantics<parallel>, #tpu.dimension_semantics<parallel>, #tpu.dimension_semantics<parallel>], iteration_bounds = array<i64: 2, 1, 1>, scalar_prefetch = 0 : i64, scratch_operands = 2 : i64, tpu.core_type = #tpu.core_type<tc>, window_params = [{transform_indices = @transform_0, window_bounds = array<i64: 1, 8, 384>}, {transform_indices = @transform_1, window_bounds = array<i64: 1, 8, 384>}, {transform_indices = @transform_2, window_bounds = array<i64: 8, 72>}, {transform_indices = @transform_3, window_bounds = array<i64: 8, 1>}, {transform_indices = @transform_4, window_bounds = array<i64: 1, 8, 384>}]} {
    %c0 = arith.constant 0 : index
    %c0_0 = arith.constant 0 : index
    %c0_1 = arith.constant 0 : index
    %0 = vector.load %arg3[%c0, %c0_0, %c0_1] : memref<1x8x384xf32, #tpu.memory_space<vmem>>, vector<1x8x384xf32>
    %1 = vector.shape_cast %0 : vector<1x8x384xf32> to vector<8x384xf32>
    %c0_2 = arith.constant 0 : index
    %c0_3 = arith.constant 0 : index
    %2 = vector.load %arg8[%c0_2, %c0_3] : memref<8x512xf32, #tpu.memory_space<vmem>>, vector<8x384xf32>
    tpu.vector_store %arg8[%c0_2, %c0_3], %1 {strides = array<i32>} : memref<8x512xf32, #tpu.memory_space<vmem>>, vector<8x384xf32>,
    %c0_4 = arith.constant 0 : index
    %c0_5 = arith.constant 0 : index
    %c0_6 = arith.constant 0 : index
    %3 = vector.load %arg4[%c0_4, %c0_5, %c0_6] : memref<1x8x384xf32, #tpu.memory_space<vmem>>, vector<1x8x128xf32>
    %4 = vector.shape_cast %3 : vector<1x8x128xf32> to vector<8x128xf32>
    %c0_7 = arith.constant 0 : index
    %c384 = arith.constant 384 : index
    %5 = vector.load %arg8[%c0_7, %c384] : memref<8x512xf32, #tpu.memory_space<vmem>>, vector<8x128xf32>
    tpu.vector_store %arg8[%c0_7, %c384], %4 {strides = array<i32>} : memref<8x512xf32, #tpu.memory_space<vmem>>, vector<8x128xf32>,
    %c0_8 = arith.constant 0 : index
    %c0_9 = arith.constant 0 : index
    %6 = vector.load %arg8[%c0_8, %c0_9] : memref<8x512xf32, #tpu.memory_space<vmem>>, vector<8x384xf32>
    %c0_10 = arith.constant 0 : index
    %c0_11 = arith.constant 0 : index
    %7 = vector.load %arg9[%c0_10, %c0_11] : memref<72x384xf32, #tpu.memory_space<vmem>>, vector<8x384xf32>
    tpu.vector_store %arg9[%c0_10, %c0_11], %6 {strides = array<i32>} : memref<72x384xf32, #tpu.memory_space<vmem>>, vector<8x384xf32>,
    %c0_12 = arith.constant 0 : index
    %c1 = arith.constant 1 : index
    %8 = vector.load %arg8[%c0_12, %c1] : memref<8x512xf32, #tpu.memory_space<vmem>>, vector<8x384xf32>
    %c8 = arith.constant 8 : index
    %c0_13 = arith.constant 0 : index
    %9 = vector.load %arg9[%c8, %c0_13] : memref<72x384xf32, #tpu.memory_space<vmem>>, vector<8x384xf32>
    tpu.vector_store %arg9[%c8, %c0_13], %8 {strides = array<i32>} : memref<72x384xf32, #tpu.memory_space<vmem>>, vector<8x384xf32>,
    %c0_14 = arith.constant 0 : index
    %c2 = arith.constant 2 : index
    %10 = vector.load %arg8[%c0_14, %c2] : memref<8x512xf32, #tpu.memory_space<vmem>>, vector<8x384xf32>
    %c16 = arith.constant 16 : index
    %c0_15 = arith.constant 0 : index
    %11 = vector.load %arg9[%c16, %c0_15] : memref<72x384xf32, #tpu.memory_space<vmem>>, vector<8x384xf32>
    tpu.vector_store %arg9[%c16, %c0_15], %10 {strides = array<i32>} : memref<72x384xf32, #tpu.memory_space<vmem>>, vector<8x384xf32>,
    %c0_16 = arith.constant 0 : index
    %c24 = arith.constant 24 : index
    %12 = vector.load %arg8[%c0_16, %c24] : memref<8x512xf32, #tpu.memory_space<vmem>>, vector<8x384xf32>
    %c24_17 = arith.constant 24 : index
    %c0_18 = arith.constant 0 : index
    %13 = vector.load %arg9[%c24_17, %c0_18] : memref<72x384xf32, #tpu.memory_space<vmem>>, vector<8x384xf32>
    tpu.vector_store %arg9[%c24_17, %c0_18], %12 {strides = array<i32>} : memref<72x384xf32, #tpu.memory_space<vmem>>, vector<8x384xf32>,
    %c0_19 = arith.constant 0 : index
    %c25 = arith.constant 25 : index
    %14 = vector.load %arg8[%c0_19, %c25] : memref<8x512xf32, #tpu.memory_space<vmem>>, vector<8x384xf32>
    %c32 = arith.constant 32 : index
    %c0_20 = arith.constant 0 : index
    %15 = vector.load %arg9[%c32, %c0_20] : memref<72x384xf32, #tpu.memory_space<vmem>>, vector<8x384xf32>
    tpu.vector_store %arg9[%c32, %c0_20], %14 {strides = array<i32>} : memref<72x384xf32, #tpu.memory_space<vmem>>, vector<8x384xf32>,
    %c0_21 = arith.constant 0 : index
    %c26 = arith.constant 26 : index
    %16 = vector.load %arg8[%c0_21, %c26] : memref<8x512xf32, #tpu.memory_space<vmem>>, vector<8x384xf32>
    %c40 = arith.constant 40 : index
    %c0_22 = arith.constant 0 : index
    %17 = vector.load %arg9[%c40, %c0_22] : memref<72x384xf32, #tpu.memory_space<vmem>>, vector<8x384xf32>
    tpu.vector_store %arg9[%c40, %c0_22], %16 {strides = array<i32>} : memref<72x384xf32, #tpu.memory_space<vmem>>, vector<8x384xf32>,
    %c0_23 = arith.constant 0 : index
    %c48 = arith.constant 48 : index
    %18 = vector.load %arg8[%c0_23, %c48] : memref<8x512xf32, #tpu.memory_space<vmem>>, vector<8x384xf32>
    %c48_24 = arith.constant 48 : index
    %c0_25 = arith.constant 0 : index
    %19 = vector.load %arg9[%c48_24, %c0_25] : memref<72x384xf32, #tpu.memory_space<vmem>>, vector<8x384xf32>
    tpu.vector_store %arg9[%c48_24, %c0_25], %18 {strides = array<i32>} : memref<72x384xf32, #tpu.memory_space<vmem>>, vector<8x384xf32>,
    %c0_26 = arith.constant 0 : index
    %c49 = arith.constant 49 : index
    %20 = vector.load %arg8[%c0_26, %c49] : memref<8x512xf32, #tpu.memory_space<vmem>>, vector<8x384xf32>
    %c56 = arith.constant 56 : index
    %c0_27 = arith.constant 0 : index
    %21 = vector.load %arg9[%c56, %c0_27] : memref<72x384xf32, #tpu.memory_space<vmem>>, vector<8x384xf32>
    tpu.vector_store %arg9[%c56, %c0_27], %20 {strides = array<i32>} : memref<72x384xf32, #tpu.memory_space<vmem>>, vector<8x384xf32>,
    %c0_28 = arith.constant 0 : index
    %c50 = arith.constant 50 : index
    %22 = vector.load %arg8[%c0_28, %c50] : memref<8x512xf32, #tpu.memory_space<vmem>>, vector<8x384xf32>
    %c64 = arith.constant 64 : index
    %c0_29 = arith.constant 0 : index
    %23 = vector.load %arg9[%c64, %c0_29] : memref<72x384xf32, #tpu.memory_space<vmem>>, vector<8x384xf32>
    tpu.vector_store %arg9[%c64, %c0_29], %22 {strides = array<i32>} : memref<72x384xf32, #tpu.memory_space<vmem>>, vector<8x384xf32>,
    %c0_30 = arith.constant 0 : index
    %c0_31 = arith.constant 0 : index
    %24 = vector.load %arg5[%c0_30, %c0_31] : memref<8x72xf32, #tpu.memory_space<vmem>>, vector<8x72xf32>
    %c0_32 = arith.constant 0 : index
    %c0_33 = arith.constant 0 : index
    %25 = vector.load %arg9[%c0_32, %c0_33] : memref<72x384xf32, #tpu.memory_space<vmem>>, vector<72x384xf32>
    %cst = arith.constant dense<0.000000e+00> : vector<8x384xf32>
    %26 = tpu.matmul %24, %25, %cst {dimension_numbers = #tpu.dot_dimension_numbers<[1], [0], [0], [1], [0, 0, 1, 1], [], []>} : vector<8x72xf32>, vector<72x384xf32>, vector<8x384xf32> -> vector<8x384xf32>
    %c0_34 = arith.constant 0 : index
    %c0_35 = arith.constant 0 : index
    %27 = vector.load %arg6[%c0_34, %c0_35] : memref<8x1xf32, #tpu.memory_space<vmem>>, vector<8x1xf32>
    %28 = vector.broadcast %27 : vector<8x1xf32> to vector<8x384xf32>
    %29 = arith.addf %26, %28 : vector<8x384xf32>
    %c0_36 = arith.constant 0 : index
    %c0_37 = arith.constant 0 : index
    %c0_38 = arith.constant 0 : index
    %30 = vector.load %arg7[%c0_36, %c0_37, %c0_38] : memref<1x8x384xf32, #tpu.memory_space<vmem>>, vector<1x8x384xf32>
    %31 = vector.shape_cast %30 : vector<1x8x384xf32> to vector<8x384xf32>
    %32 = vector.shape_cast %29 : vector<8x384xf32> to vector<1x8x384xf32>
    tpu.vector_store %arg7[%c0_36, %c0_37, %c0_38], %32 {strides = array<i32>} : memref<1x8x384xf32, #tpu.memory_space<vmem>>, vector<1x8x384xf32>,
    return
  }
  func.func @transform_0(%arg0: i32, %arg1: i32, %arg2: i32) -> (i32, i32, i32) {
    %c0_i32 = arith.constant 0 : i32
    %c0_i32_0 = arith.constant 0 : i32
    return %arg0, %c0_i32, %arg2 : i32, i32, i32
  }
  func.func @transform_1(%arg0: i32, %arg1: i32, %arg2: i32) -> (i32, i32, i32) {
    %c1_i32 = arith.constant 1 : i32
    %0 = arith.addi %arg2, %c1_i32 : i32
    %c0_i32 = arith.constant 0 : i32
    %c0_i32_0 = arith.constant 0 : i32
    return %arg0, %c0_i32, %0 : i32, i32, i32
  }
  func.func @transform_2(%arg0: i32, %arg1: i32, %arg2: i32) -> (i32, i32) {
    %c0_i32 = arith.constant 0 : i32
    %c0_i32_0 = arith.constant 0 : i32
    return %arg1, %c0_i32 : i32, i32
  }
  func.func @transform_3(%arg0: i32, %arg1: i32, %arg2: i32) -> (i32, i32) {
    %c0_i32 = arith.constant 0 : i32
    %c0_i32_0 = arith.constant 0 : i32
    return %arg1, %c0_i32 : i32, i32
  }
  func.func @transform_4(%arg0: i32, %arg1: i32, %arg2: i32) -> (i32, i32, i32) {
    %c0_i32 = arith.constant 0 : i32
    return %arg0, %arg1, %arg2 : i32, i32, i32
  }
}

</mosaic_0001>

<llo_original>
// kernel: tpu_custom_call.1
$region0: #{tpu_custom_call.1}
  #allocation0 [shape = 'u32[]', space=smem, size = 0x4, offset = 0x4, fixed_abs, tag = 'smem constant byte address 0x4 - core index']
  #allocation1 [shape = 'u32[144,128]{1,0:T(1,128)}', space=vmem, size = 0x12000, scoped, tag = 'internal scratch']
  #allocation2 [shape = 'f32[8,512]{1,0:T(8,128)}', space=vmem, size = 0x4000, scoped, tag = 'scratch operand']
  #allocation3 [shape = 'f32[72,384]{1,0:T(8,128)}', space=vmem, size = 0x1b000, scoped, tag = 'scratch operand']
  %s0 = inlined_call_operand.hbm [shape: f32[2,8,768], index: 0, kind: input, shape index: {}]
  %s1 = inlined_call_operand.hbm [shape: f32[2,8,768], index: 1, kind: input, shape index: {}]
  %s2 = inlined_call_operand.vmem [shape: f32[8,72], index: 2, kind: input, shape index: {}]
  %s3 = inlined_call_operand.vmem [shape: f32[8,1], index: 3, kind: input, shape index: {}]
  %s4 = inlined_call_operand.hbm [shape: f32[2,8,384], index: 4, kind: output, shape index: {}]
  %s5 = sld [smem:[#allocation0]]
  $region57: #{tpu_custom_call.1} parent=0
    _
  %s7 = ssub.s32 1, %s5
  %s8 = scalar_select 0, %s7, %s5
  $region1: #{tpu_custom_call.1} parent=0
    #allocation4 [shape = 'u8[24576]{0}', space=vmem, size = 0x6000, scoped, tag = 'input window, operand 0']
    #allocation5 [shape = 's32[2]{0}', space=sflag, size = 0x8, scoped, tag = 'scoped memory for tpu_custom_call.1']
    #allocation6 [shape = 's32[2]{0}', space=sflag, size = 0x8, scoped, tag = 'scoped memory for tpu_custom_call.1']
    #allocation7 [shape = 'u8[24576]{0}', space=vmem, size = 0x6000, scoped, tag = 'input window, operand 1']
    #allocation8 [shape = 's32[2]{0}', space=sflag, size = 0x8, scoped, tag = 'scoped memory for tpu_custom_call.1']
    #allocation9 [shape = 'u8[24576]{0}', space=vmem, size = 0x6000, scoped, tag = 'output window, operand 0']
    %9 = vsyncpa [#allocation5], 0
    %s10 = scalar_lea.sflag [#allocation5], 1
    %11 = vsyncpa %s10, 0
    %12 = vsyncpa [#allocation8], 0
    %s13 = scalar_lea.sflag [#allocation8], 1
    %14 = vsyncpa %s13, 0
    %15 = vsyncpa [#allocation6], 0
    %s16 = scalar_lea.sflag [#allocation6], 1
    %17 = vsyncpa %s16, 0
    loop: start=0, step=1, limit=4
    $region2: #{tpu_custom_call.1} parent=1 // loop_pre_header
      _
    $region3: #{tpu_custom_call.1} parent=1 // loop_header
      %s19 = sphi 0, %s23
      %p20 = scmp.ge.s32.totalorder %s19, 4
      %s26 = sphi 0, %s45
      %s27 = sphi 0, %s41
      %s28 = sphi 0, %s37
      %s29 = sphi 0, %s26
      %s30 = sphi 0, %s27
      %s31 = sphi 0, %s28
      %s32 = sphi 0, %s29
      %s33 = sphi 0, %s30
      %s34 = sphi 0, %s31
      %s50 = sphi 0, %s52
      %s53 = sphi 0, %s50
      %s54 = sphi 0, %s53
      %s70 = sphi 0, %s54
      %s80 = sphi 0, %s82
      %s83 = sphi 0, %s80
      %s84 = sphi 0, %s83
      %s100 = sphi 0, %s84
      %s106 = sphi 0, %s108
      %s109 = sphi 0, %s106
      %s110 = sphi 0, %s109
      %s126 = sphi 0, %s110
      %s132 = sphi 0, %s134
      %s135 = sphi 0, %s132
      %s136 = sphi 0, %s135
      %s152 = sphi 0, %s136
      %s162 = sphi 0, %s164
      %s165 = sphi 0, %s162
      %s166 = sphi 0, %s165
      %s182 = sphi 0, %s166
    $region4: #{tpu_custom_call.1} parent=1 // loop_header_branch
      %22 = sbr.rel (%p20) target = $region8
    $region5: #{tpu_custom_call.1} parent=1 // loop_body
      %s24 = ssub.s32 %s19, 1
      %s25 = ssub.s32 %s19, 2
      %s35 = sadd.s32 1, %s28
      %p36 = scmp.ge.s32.totalorder %s35, 1
      %s37 = scalar_select %p36, 0, %s35
      %s38 = sadd.s32 1, %s27
      %s39 = scalar_select %p36, %s38, %s27
      %p40 = scmp.ge.s32.totalorder %s39, 1
      %s41 = scalar_select %p40, 0, %s39
      %s42 = sadd.s32 1, %s26
      %s43 = scalar_select %p40, %s42, %s26
      %p44 = scmp.ge.s32.totalorder %s43, 2
      %s45 = scalar_select %p44, 0, %s43
      %s46 = ssub.s32 %s26, %s45
      %s47 = ssub.s32 %s28, %s37
      %s48 = sor.u32 %s46, %s47
      %p49 = scmp.eq.s32.totalorder %s48, 0
      %s51 = sadd.s32 %s50, 1
      %s52 = scalar_select %p49, %s50, %s51
      %p55 = pneg %p49
      %p56 = scmp.eq.s32.totalorder %s19, 1
      %p57 = por %p55, %p56
      %p58 = scmp.ne.s32.totalorder %s50, %s53
      %p59 = scmp.eq.s32.totalorder %s19, 0
      %p60 = por %p58, %p59
      %p61 = scmp.ne.s32.totalorder %s50, %s53
      %p62 = scmp.eq.s32.totalorder %s24, 1
      %p63 = por %p61, %p62
      %p64 = scmp.ne.s32.totalorder %s53, %s54
      %p65 = scmp.eq.s32.totalorder %s24, 0
      %p66 = por %p64, %p65
      %p67 = scmp.ne.s32.totalorder %s53, %s54
      %p68 = scmp.eq.s32.totalorder %s25, 1
      %p69 = por %p67, %p68
      %p71 = scmp.ne.s32.totalorder %s54, %s70
      %p72 = scmp.eq.s32.totalorder %s25, 0
      %p73 = por %p71, %p72
      %s74 = sadd.s32 %s28, 1
      %s75 = sadd.s32 %s37, 1
      %s76 = ssub.s32 %s26, %s45
      %s77 = ssub.s32 %s74, %s75
      %s78 = sor.u32 %s76, %s77
      %p79 = scmp.eq.s32.totalorder %s78, 0
      %s81 = sadd.s32 %s80, 1
      %s82 = scalar_select %p79, %s80, %s81
      %p85 = pneg %p79
      %p86 = scmp.eq.s32.totalorder %s19, 1
      %p87 = por %p85, %p86
      %p88 = scmp.ne.s32.totalorder %s80, %s83
      %p89 = scmp.eq.s32.totalorder %s19, 0
      %p90 = por %p88, %p89
      %p91 = scmp.ne.s32.totalorder %s80, %s83
      %p92 = scmp.eq.s32.totalorder %s24, 1
      %p93 = por %p91, %p92
      %p94 = scmp.ne.s32.totalorder %s83, %s84
      %p95 = scmp.eq.s32.totalorder %s24, 0
      %p96 = por %p94, %p95
      %p97 = scmp.ne.s32.totalorder %s83, %s84
      %p98 = scmp.eq.s32.totalorder %s25, 1
      %p99 = por %p97, %p98
      %p101 = scmp.ne.s32.totalorder %s84, %s100
      %p102 = scmp.eq.s32.totalorder %s25, 0
      %p103 = por %p101, %p102
      %s104 = ssub.s32 %s27, %s41
      %p105 = scmp.eq.s32.totalorder %s104, 0
      %s107 = sadd.s32 %s106, 1
      %s108 = scalar_select %p105, %s106, %s107
      %p111 = pneg %p105
      %p112 = scmp.eq.s32.totalorder %s19, 1
      %p113 = por %p111, %p112
      %p114 = scmp.ne.s32.totalorder %s106, %s109
      %p115 = scmp.eq.s32.totalorder %s19, 0
      %p116 = por %p114, %p115
      %p117 = scmp.ne.s32.totalorder %s106, %s109
      %p118 = scmp.eq.s32.totalorder %s24, 1
      %p119 = por %p117, %p118
      %p120 = scmp.ne.s32.totalorder %s109, %s110
      %p121 = scmp.eq.s32.totalorder %s24, 0
      %p122 = por %p120, %p121
      %p123 = scmp.ne.s32.totalorder %s109, %s110
      %p124 = scmp.eq.s32.totalorder %s25, 1
      %p125 = por %p123, %p124
      %p127 = scmp.ne.s32.totalorder %s110, %s126
      %p128 = scmp.eq.s32.totalorder %s25, 0
      %p129 = por %p127, %p128
      %s130 = ssub.s32 %s27, %s41
      %p131 = scmp.eq.s32.totalorder %s130, 0
      %s133 = sadd.s32 %s132, 1
      %s134 = scalar_select %p131, %s132, %s133
      %p137 = pneg %p131
      %p138 = scmp.eq.s32.totalorder %s19, 1
      %p139 = por %p137, %p138
      %p140 = scmp.ne.s32.totalorder %s132, %s135
      %p141 = scmp.eq.s32.totalorder %s19, 0
      %p142 = por %p140, %p141
      %p143 = scmp.ne.s32.totalorder %s132, %s135
      %p144 = scmp.eq.s32.totalorder %s24, 1
      %p145 = por %p143, %p144
      %p146 = scmp.ne.s32.totalorder %s135, %s136
      %p147 = scmp.eq.s32.totalorder %s24, 0
      %p148 = por %p146, %p147
      %p149 = scmp.ne.s32.totalorder %s135, %s136
      %p150 = scmp.eq.s32.totalorder %s25, 1
      %p151 = por %p149, %p150
      %p153 = scmp.ne.s32.totalorder %s136, %s152
      %p154 = scmp.eq.s32.totalorder %s25, 0
      %p155 = por %p153, %p154
      %s156 = ssub.s32 %s26, %s45
      %s157 = ssub.s32 %s27, %s41
      %s158 = sor.u32 %s156, %s157
      %s159 = ssub.s32 %s28, %s37
      %s160 = sor.u32 %s158, %s159
      %p161 = scmp.eq.s32.totalorder %s160, 0
      %s163 = sadd.s32 %s162, 1
      %s164 = scalar_select %p161, %s162, %s163
      %p167 = pneg %p161
      %p168 = scmp.eq.s32.totalorder %s19, 1
      %p169 = por %p167, %p168
      %p170 = scmp.ne.s32.totalorder %s162, %s165
      %p171 = scmp.eq.s32.totalorder %s19, 0
      %p172 = por %p170, %p171
      %p173 = scmp.ne.s32.totalorder %s162, %s165
      %p174 = scmp.eq.s32.totalorder %s24, 1
      %p175 = por %p173, %p174
      %p176 = scmp.ne.s32.totalorder %s165, %s166
      %p177 = scmp.eq.s32.totalorder %s24, 0
      %p178 = por %p176, %p177
      %p179 = scmp.ne.s32.totalorder %s165, %s166
      %p180 = scmp.eq.s32.totalorder %s25, 1
      %p181 = por %p179, %p180
      %p183 = scmp.ne.s32.totalorder %s166, %s182
      %p184 = scmp.eq.s32.totalorder %s25, 0
      %p185 = por %p183, %p184
      %p186 = scmp.le.s32.totalorder 1, %s19
      %p187 = scmp.lt.s32.totalorder %s19, 3
      %p188 = pnand %p186, %p187
      %p189 = pneg %p188
      // Predicated region
      $region9: #{tpu_custom_call.1} parent=5 // pred_check
        _
      $region10: #{tpu_custom_call.1} parent=5 // pred_check_branch
        %191 = sbr.rel (%p188) target = $region12
      $region11: #{tpu_custom_call.1} parent=5 // pred_region
        %s192 = ssub.s32 %s19, 1
        // Predicated region
        $region13: #{tpu_custom_call.1} parent=11 // pred_check
          %p193 = pneg %p122
        $region14: #{tpu_custom_call.1} parent=11 // pred_check_branch
          %195 = sbr.rel (%p193) target = $region16
        $region15: #{tpu_custom_call.1} parent=11 // pred_region
          %p196 = scmp.lt.s32.totalorder %s30, 0
          %s197 = scalar_select %p196, %s30, 0
          %s198 = smul.addr %s197, 8
          %s199 = scalar_lea.vmem %s2, %s198
        $region16: #{tpu_custom_call.1} parent=11 // pred_fallthru
          _
        // Predicated region
        $region17: #{tpu_custom_call.1} parent=11 // pred_check
          %p200 = pneg %p148
        $region18: #{tpu_custom_call.1} parent=11 // pred_check_branch
          %202 = sbr.rel (%p200) target = $region20
        $region19: #{tpu_custom_call.1} parent=11 // pred_region
          %p203 = scmp.lt.s32.totalorder %s30, 0
          %s204 = scalar_select %p203, %s30, 0
          %s205 = smul.addr %s204, 8
          %s206 = scalar_lea.vmem %s3, %s205
        $region20: #{tpu_custom_call.1} parent=11 // pred_fallthru
          _
      $region12: #{tpu_custom_call.1} parent=5 // pred_fallthru
        _
      %p207 = scmp.lt.s32.totalorder %s19, 2
      // Predicated region
      $region21: #{tpu_custom_call.1} parent=5 // pred_check
        %p208 = pneg %p207
      $region22: #{tpu_custom_call.1} parent=5 // pred_check_branch
        %210 = sbr.rel (%p208) target = $region24
      $region23: #{tpu_custom_call.1} parent=5 // pred_region
        // Predicated region
        $region25: #{tpu_custom_call.1} parent=23 // pred_check
          %p211 = pneg %p60
        $region26: #{tpu_custom_call.1} parent=23 // pred_check_branch
          %213 = sbr.rel (%p211) target = $region28
        $region27: #{tpu_custom_call.1} parent=23 // pred_region
          %s214 = sand.u32 %s50, 1
          %s215 = scalar_lea.sflag [#allocation5], %s214
          %s216 = sand.u32 %s50, 1
          %s217 = smul.addr %s216, 24
          %s218 = scalar_lea.vmem [#allocation4], %s217
          %s219 = smul.u32 3, %s28
          %s221 = ssub.s32 384, 384
          %222 = vsyncadd %s215, %s221
          %s223 = smul.addr %s26, 6
          %s224 = sadd.s32 %s219, %s223
          %s225 = smul.addr %s224, 128
          %s226 = scalar_lea.hbm %s0, %s225
          %s228 = sshll.u32 %s218, 4
          %s229 = int_to_ptr.vmem [resolvable:$true] %s228
          %231 = dma.hbm_to_vmem [thread:$0]  %s226, 384, %s229, %s215
        $region28: #{tpu_custom_call.1} parent=23 // pred_fallthru
          _
        // Predicated region
        $region29: #{tpu_custom_call.1} parent=23 // pred_check
          %p232 = pneg %p90
        $region30: #{tpu_custom_call.1} parent=23 // pred_check_branch
          %234 = sbr.rel (%p232) target = $region32
        $region31: #{tpu_custom_call.1} parent=23 // pred_region
          %s235 = sand.u32 %s80, 1
          %s236 = scalar_lea.sflag [#allocation8], %s235
          %s237 = sand.u32 %s80, 1
          %s238 = smul.addr %s237, 24
          %s239 = scalar_lea.vmem [#allocation7], %s238
          %s240 = sadd.s32 %s28, 1
          %s241 = smul.u32 3, %s240
          %s243 = ssub.s32 384, 384
          %244 = vsyncadd %s236, %s243
          %s245 = smul.addr %s26, 6
          %s246 = sadd.s32 %s241, %s245
          %s247 = smul.addr %s246, 128
          %s248 = scalar_lea.hbm %s1, %s247
          %s250 = sshll.u32 %s239, 4
          %s251 = int_to_ptr.vmem [resolvable:$true] %s250
          %253 = dma.hbm_to_vmem [thread:$0]  %s248, 384, %s251, %s236
        $region32: #{tpu_custom_call.1} parent=23 // pred_fallthru
          _
      $region24: #{tpu_custom_call.1} parent=5 // pred_fallthru
        _
      %p254 = scmp.le.s32.totalorder 1, %s19
      %p255 = scmp.lt.s32.totalorder %s19, 3
      %p256 = pnand %p254, %p255
      %p257 = pneg %p256
      // Predicated region
      $region33: #{tpu_custom_call.1} parent=5 // pred_check
        _
      $region34: #{tpu_custom_call.1} parent=5 // pred_check_branch
        %259 = sbr.rel (%p256) target = $region36
      $region35: #{tpu_custom_call.1} parent=5 // pred_region
        %s260 = ssub.s32 %s19, 1
        %s261 = sand.u32 %s53, 1
        %s262 = scalar_lea.sflag [#allocation5], %s261
        %s263 = sand.u32 %s53, 1
        %s264 = smul.addr %s263, 24
        %s265 = scalar_lea.vmem [#allocation4], %s264
        // Predicated region
        $region37: #{tpu_custom_call.1} parent=35 // pred_check
          %p266 = pneg %p66
        $region38: #{tpu_custom_call.1} parent=35 // pred_check_branch
          %268 = sbr.rel (%p266) target = $region40
        $region39: #{tpu_custom_call.1} parent=35 // pred_region
          %269 = dma.done %s262, 384
        $region40: #{tpu_custom_call.1} parent=35 // pred_fallthru
          _
        %s270 = sand.u32 %s83, 1
        %s271 = scalar_lea.sflag [#allocation8], %s270
        %s272 = sand.u32 %s83, 1
        %s273 = smul.addr %s272, 24
        %s274 = scalar_lea.vmem [#allocation7], %s273
        // Predicated region
        $region41: #{tpu_custom_call.1} parent=35 // pred_check
          %p275 = pneg %p96
        $region42: #{tpu_custom_call.1} parent=35 // pred_check_branch
          %277 = sbr.rel (%p275) target = $region44
        $region43: #{tpu_custom_call.1} parent=35 // pred_region
          %278 = dma.done %s271, 384
        $region44: #{tpu_custom_call.1} parent=35 // pred_fallthru
          _
        %s279 = sand.u32 %s53, 1
        %s280 = scalar_lea.sflag [#allocation5], %s279
        %s281 = sand.u32 %s53, 1
        %s282 = smul.addr %s281, 24
        %s283 = scalar_lea.vmem [#allocation4], %s282
        %p284 = pneg %p66
        %p285 = pneg %p63
        %s286 = sand.u32 %s83, 1
        %s287 = scalar_lea.sflag [#allocation8], %s286
        %s288 = sand.u32 %s83, 1
        %s289 = smul.addr %s288, 24
        %s290 = scalar_lea.vmem [#allocation7], %s289
        %p291 = pneg %p96
        %p292 = pneg %p93
        %p293 = scmp.lt.s32.totalorder %s30, 0
        %s294 = scalar_select %p293, %s30, 0
        %s295 = smul.addr %s294, 8
        %s296 = scalar_lea.vmem %s2, %s295
        %p297 = pneg %p122
        %p298 = pneg %p119
        %p299 = scmp.lt.s32.totalorder %s30, 0
        %s300 = scalar_select %p299, %s30, 0
        %s301 = smul.addr %s300, 8
        %s302 = scalar_lea.vmem %s3, %s301
        %p303 = pneg %p148
        %p304 = pneg %p145
        %p305 = pneg %p178
        %p306 = pneg %p175
        %s307 = sand.u32 %s165, 1
        %s308 = scalar_lea.sflag [#allocation6], %s307
        %s309 = sand.u32 %s165, 1
        %s310 = smul.addr %s309, 24
        %s311 = scalar_lea.vmem [#allocation9], %s310
        %s312 = smul.u32 3, %s31
        %s313 = sadd.s32 %s31, 1
        %s314 = smul.u32 3, %s313
        %p315 = scmp.lt.s32.totalorder %s30, 0
        %s316 = scalar_select %p315, %s30, 0
        %s317 = smul.addr %s316, 8
        %s318 = scalar_lea.vmem %s2, %s317
        %p319 = scmp.lt.s32.totalorder %s30, 0
        %s320 = scalar_select %p319, %s30, 0
        %s321 = smul.addr %s320, 8
        %s322 = scalar_lea.vmem %s3, %s321
        %s323 = smul.u32 3, %s31
        %v324 = vld [vmem:[%s265] sm:$0xff]
        %v325 = vld [vmem:[%s265 + $0x8] sm:$0xff]
        %v326 = vld [vmem:[%s265 + $0x10] sm:$0xff]
        %327 = vst [vmem:[#allocation2] sm:$0xff] %v324
        %328 = vst [vmem:[#allocation2 + $0x8] sm:$0xff] %v325
        %329 = vst [vmem:[#allocation2 + $0x10] sm:$0xff] %v326
        %v330 = vld [vmem:[%s274] sm:$0xff]
        %331 = vst [vmem:[#allocation2 + $0x18] sm:$0xff] %v330
        %v332 = vld [vmem:[#allocation2] sm:$0xff]
        %v333 = vld [vmem:[#allocation2 + $0x8] sm:$0xff]
        %v334 = vld [vmem:[#allocation2 + $0x10] sm:$0xff]
        %335 = vst [vmem:[#allocation3] sm:$0xff] %v332
        %336 = vst [vmem:[#allocation3 + $0x8] sm:$0xff] %v333
        %337 = vst [vmem:[#allocation3 + $0x10] sm:$0xff] %v334
        %v338 = vld [vmem:[#allocation2] sm:$0xff]
        %v339 = vld [vmem:[#allocation2 + $0x8] sm:$0xff]
        %v340 = vld [vmem:[#allocation2 + $0x10] sm:$0xff]
        %v341 = vld [vmem:[#allocation2 + $0x18] sm:$0xff]
        %346 = vrot.lane.b32.xlu0 %v338, 127
        %v347 = vpop.permute.xlu0 %346
        %348 = vrot.lane.b32.xlu0 %v339, 127
        %v349 = vpop.permute.xlu0 %348
        %350 = vrot.lane.b32.xlu0 %v340, 127
        %v351 = vpop.permute.xlu0 %350
        %352 = vrot.lane.b32.xlu0 %v341, 127
        %v353 = vpop.permute.xlu0 %352
        %vm354 = vcmask 1039360
        %v355 = vsel %vm354, %v347, %v349
        %v356 = vsel %vm354, %v349, %v351
        %v357 = vsel %vm354, %v351, %v353
        %361 = vst [vmem:[#allocation3 + $0x18] sm:$0xff] %v355
        %362 = vst [vmem:[#allocation3 + $0x20] sm:$0xff] %v356
        %363 = vst [vmem:[#allocation3 + $0x28] sm:$0xff] %v357
        %v364 = vld [vmem:[#allocation2] sm:$0xff]
        %v365 = vld [vmem:[#allocation2 + $0x8] sm:$0xff]
        %v366 = vld [vmem:[#allocation2 + $0x10] sm:$0xff]
        %v367 = vld [vmem:[#allocation2 + $0x18] sm:$0xff]
        %372 = vrot.lane.b32.xlu0 %v364, 126
        %v373 = vpop.permute.xlu0 %372
        %374 = vrot.lane.b32.xlu0 %v365, 126
        %v375 = vpop.permute.xlu0 %374
        %376 = vrot.lane.b32.xlu0 %v366, 126
        %v377 = vpop.permute.xlu0 %376
        %378 = vrot.lane.b32.xlu0 %v367, 126
        %v379 = vpop.permute.xlu0 %378
        %vm380 = vcmask 1031168
        %v381 = vsel %vm380, %v373, %v375
        %v382 = vsel %vm380, %v375, %v377
        %v383 = vsel %vm380, %v377, %v379
        %387 = vst [vmem:[#allocation3 + $0x30] sm:$0xff] %v381
        %388 = vst [vmem:[#allocation3 + $0x38] sm:$0xff] %v382
        %389 = vst [vmem:[#allocation3 + $0x40] sm:$0xff] %v383
        %v390 = vld [vmem:[#allocation2] sm:$0xff]
        %v391 = vld [vmem:[#allocation2 + $0x8] sm:$0xff]
        %v392 = vld [vmem:[#allocation2 + $0x10] sm:$0xff]
        %v393 = vld [vmem:[#allocation2 + $0x18] sm:$0xff]
        %398 = vrot.lane.b32.xlu0 %v390, 104
        %v399 = vpop.permute.xlu0 %398
        %400 = vrot.lane.b32.xlu0 %v391, 104
        %v401 = vpop.permute.xlu0 %400
        %402 = vrot.lane.b32.xlu0 %v392, 104
        %v403 = vpop.permute.xlu0 %402
        %404 = vrot.lane.b32.xlu0 %v393, 104
        %v405 = vpop.permute.xlu0 %404
        %vm406 = vcmask 850944
        %v407 = vsel %vm406, %v399, %v401
        %v408 = vsel %vm406, %v401, %v403
        %v409 = vsel %vm406, %v403, %v405
        %413 = vst [vmem:[#allocation3 + $0x48] sm:$0xff] %v407
        %414 = vst [vmem:[#allocation3 + $0x50] sm:$0xff] %v408
        %415 = vst [vmem:[#allocation3 + $0x58] sm:$0xff] %v409
        %v416 = vld [vmem:[#allocation2] sm:$0xff]
        %v417 = vld [vmem:[#allocation2 + $0x8] sm:$0xff]
        %v418 = vld [vmem:[#allocation2 + $0x10] sm:$0xff]
        %v419 = vld [vmem:[#allocation2 + $0x18] sm:$0xff]
        %424 = vrot.lane.b32.xlu0 %v416, 103
        %v425 = vpop.permute.xlu0 %424
        %426 = vrot.lane.b32.xlu0 %v417, 103
        %v427 = vpop.permute.xlu0 %426
        %428 = vrot.lane.b32.xlu0 %v418, 103
        %v429 = vpop.permute.xlu0 %428
        %430 = vrot.lane.b32.xlu0 %v419, 103
        %v431 = vpop.permute.xlu0 %430
        %vm432 = vcmask 842752
        %v433 = vsel %vm432, %v425, %v427
        %v434 = vsel %vm432, %v427, %v429
        %v435 = vsel %vm432, %v429, %v431
        %439 = vst [vmem:[#allocation3 + $0x60] sm:$0xff] %v433
        %440 = vst [vmem:[#allocation3 + $0x68] sm:$0xff] %v434
        %441 = vst [vmem:[#allocation3 + $0x70] sm:$0xff] %v435
        %v442 = vld [vmem:[#allocation2] sm:$0xff]
        %v443 = vld [vmem:[#allocation2 + $0x8] sm:$0xff]
        %v444 = vld [vmem:[#allocation2 + $0x10] sm:$0xff]
        %v445 = vld [vmem:[#allocation2 + $0x18] sm:$0xff]
        %450 = vrot.lane.b32.xlu0 %v442, 102
        %v451 = vpop.permute.xlu0 %450
        %452 = vrot.lane.b32.xlu0 %v443, 102
        %v453 = vpop.permute.xlu0 %452
        %454 = vrot.lane.b32.xlu0 %v444, 102
        %v455 = vpop.permute.xlu0 %454
        %456 = vrot.lane.b32.xlu0 %v445, 102
        %v457 = vpop.permute.xlu0 %456
        %vm458 = vcmask 834560
        %v459 = vsel %vm458, %v451, %v453
        %v460 = vsel %vm458, %v453, %v455
        %v461 = vsel %vm458, %v455, %v457
        %465 = vst [vmem:[#allocation3 + $0x78] sm:$0xff] %v459
        %466 = vst [vmem:[#allocation3 + $0x80] sm:$0xff] %v460
        %467 = vst [vmem:[#allocation3 + $0x88] sm:$0xff] %v461
        %v468 = vld [vmem:[#allocation2] sm:$0xff]
        %v469 = vld [vmem:[#allocation2 + $0x8] sm:$0xff]
        %v470 = vld [vmem:[#allocation2 + $0x10] sm:$0xff]
        %v471 = vld [vmem:[#allocation2 + $0x18] sm:$0xff]
        %476 = vrot.lane.b32.xlu0 %v468, 80
        %v477 = vpop.permute.xlu0 %476
        %478 = vrot.lane.b32.xlu0 %v469, 80
        %v479 = vpop.permute.xlu0 %478
        %480 = vrot.lane.b32.xlu0 %v470, 80
        %v481 = vpop.permute.xlu0 %480
        %482 = vrot.lane.b32.xlu0 %v471, 80
        %v483 = vpop.permute.xlu0 %482
        %vm484 = vcmask 654336
        %v485 = vsel %vm484, %v477, %v479
        %v486 = vsel %vm484, %v479, %v481
        %v487 = vsel %vm484, %v481, %v483
        %491 = vst [vmem:[#allocation3 + $0x90] sm:$0xff] %v485
        %492 = vst [vmem:[#allocation3 + $0x98] sm:$0xff] %v486
        %493 = vst [vmem:[#allocation3 + $0xa0] sm:$0xff] %v487
        %v494 = vld [vmem:[#allocation2] sm:$0xff]
        %v495 = vld [vmem:[#allocation2 + $0x8] sm:$0xff]
        %v496 = vld [vmem:[#allocation2 + $0x10] sm:$0xff]
        %v497 = vld [vmem:[#allocation2 + $0x18] sm:$0xff]
        %502 = vrot.lane.b32.xlu0 %v494, 79
        %v503 = vpop.permute.xlu0 %502
        %504 = vrot.lane.b32.xlu0 %v495, 79
        %v505 = vpop.permute.xlu0 %504
        %506 = vrot.lane.b32.xlu0 %v496, 79
        %v507 = vpop.permute.xlu0 %506
        %508 = vrot.lane.b32.xlu0 %v497, 79
        %v509 = vpop.permute.xlu0 %508
        %vm510 = vcmask 646144
        %v511 = vsel %vm510, %v503, %v505
        %v512 = vsel %vm510, %v505, %v507
        %v513 = vsel %vm510, %v507, %v509
        %517 = vst [vmem:[#allocation3 + $0xa8] sm:$0xff] %v511
        %518 = vst [vmem:[#allocation3 + $0xb0] sm:$0xff] %v512
        %519 = vst [vmem:[#allocation3 + $0xb8] sm:$0xff] %v513
        %v520 = vld [vmem:[#allocation2] sm:$0xff]
        %v521 = vld [vmem:[#allocation2 + $0x8] sm:$0xff]
        %v522 = vld [vmem:[#allocation2 + $0x10] sm:$0xff]
        %v523 = vld [vmem:[#allocation2 + $0x18] sm:$0xff]
        %528 = vrot.lane.b32.xlu0 %v520, 78
        %v529 = vpop.permute.xlu0 %528
        %530 = vrot.lane.b32.xlu0 %v521, 78
        %v531 = vpop.permute.xlu0 %530
        %532 = vrot.lane.b32.xlu0 %v522, 78
        %v533 = vpop.permute.xlu0 %532
        %534 = vrot.lane.b32.xlu0 %v523, 78
        %v535 = vpop.permute.xlu0 %534
        %vm536 = vcmask 637952
        %v537 = vsel %vm536, %v529, %v531
        %v538 = vsel %vm536, %v531, %v533
        %v539 = vsel %vm536, %v533, %v535
        %543 = vst [vmem:[#allocation3 + $0xc0] sm:$0xff] %v537
        %544 = vst [vmem:[#allocation3 + $0xc8] sm:$0xff] %v538
        %545 = vst [vmem:[#allocation3 + $0xd0] sm:$0xff] %v539
        %v546 = vld [vmem:[%s318] sm:$0xff]
        %v547 = vld [vmem:[#allocation3] sm:$0xff]
        %v548 = vld [vmem:[#allocation3 + $0x8] sm:$0xff]
        %v549 = vld [vmem:[#allocation3 + $0x10] sm:$0xff]
        %v550 = vld [vmem:[#allocation3 + $0x18] sm:$0xff]
        %v551 = vld [vmem:[#allocation3 + $0x20] sm:$0xff]
        %v552 = vld [vmem:[#allocation3 + $0x28] sm:$0xff]
        %v553 = vld [vmem:[#allocation3 + $0x30] sm:$0xff]
        %v554 = vld [vmem:[#allocation3 + $0x38] sm:$0xff]
        %v555 = vld [vmem:[#allocation3 + $0x40] sm:$0xff]
        %v556 = vld [vmem:[#allocation3 + $0x48] sm:$0xff]
        %v557 = vld [vmem:[#allocation3 + $0x50] sm:$0xff]
        %v558 = vld [vmem:[#allocation3 + $0x58] sm:$0xff]
        %v559 = vld [vmem:[#allocation3 + $0x60] sm:$0xff]
        %v560 = vld [vmem:[#allocation3 + $0x68] sm:$0xff]
        %v561 = vld [vmem:[#allocation3 + $0x70] sm:$0xff]
        %v562 = vld [vmem:[#allocation3 + $0x78] sm:$0xff]
        %v563 = vld [vmem:[#allocation3 + $0x80] sm:$0xff]
        %v564 = vld [vmem:[#allocation3 + $0x88] sm:$0xff]
        %v565 = vld [vmem:[#allocation3 + $0x90] sm:$0xff]
        %v566 = vld [vmem:[#allocation3 + $0x98] sm:$0xff]
        %v567 = vld [vmem:[#allocation3 + $0xa0] sm:$0xff]
        %v568 = vld [vmem:[#allocation3 + $0xa8] sm:$0xff]
        %v569 = vld [vmem:[#allocation3 + $0xb0] sm:$0xff]
        %v570 = vld [vmem:[#allocation3 + $0xb8] sm:$0xff]
        %v571 = vld [vmem:[#allocation3 + $0xc0] sm:$0xff]
        %v572 = vld [vmem:[#allocation3 + $0xc8] sm:$0xff]
        %v573 = vld [vmem:[#allocation3 + $0xd0] sm:$0xff]
        %v574 = vld [vmem:[%s322] sm:$0xff]
        %576 = vset.pattern.permute.xlu0 0
        %577 = vperm.xlu0 %576, %v574
        %v578 = vpop.permute.xlu0 %577
        %vm580 = vcmask 588800
        %v582 = vsel %vm580, %v546, 0
        %584 = vmatprep.subr.mxu0 0.0
        %585 = vmatpush1.msra.mxu0 0.0
        %586 = vmatprep.subr.mxu0 0.0
        %587 = vmatpush1.msra.mxu0 0.0
        %588 = vmatprep.subr.mxu0 0.0
        %589 = vmatpush1.msra.mxu0 0.0
        %590 = vmatprep.subr.mxu0 0.0
        %591 = vmatpush1.msra.mxu0 0.0
        %592 = vmatprep.subr.mxu0 0.0
        %593 = vmatpush1.msra.mxu0 0.0
        %594 = vmatprep.subr.mxu0 0.0
        %595 = vmatpush1.msra.mxu0 0.0
        %596 = vmatprep.subr.mxu0 0.0
        %597 = vmatpush1.msra.mxu0 0.0
        %598 = vmatprep.subr.mxu0 %v572
        %599 = vmatpush1.msra.mxu0 %v571
        %600 = vmatprep.subr.mxu0 %v569
        %601 = vmatpush1.msra.mxu0 %v568
        %602 = vmatprep.subr.mxu0 %v566
        %603 = vmatpush1.msra.mxu0 %v565
        %604 = vmatprep.subr.mxu0 %v563
        %605 = vmatpush1.msra.mxu0 %v562
        %606 = vmatprep.subr.mxu0 %v560
        %607 = vmatpush1.msra.mxu0 %v559
        %608 = vmatprep.subr.mxu0 %v557
        %609 = vmatpush1.msra.mxu0 %v556
        %610 = vmatprep.subr.mxu0 %v554
        %611 = vmatpush1.msra.mxu0 %v553
        %612 = vmatprep.subr.mxu0 %v551
        %613 = vmatpush1.msra.mxu0 %v550
        %614 = vmatprep.subr.mxu0 %v548
        %615 = vmatpush1.msra.mxu0 %v547
        %616 = vmatprep.subr.mxu0 0.0
        %617 = vmatpush2.msra.mxu0 0.0
        %618 = vmatprep.subr.mxu0 0.0
        %619 = vmatpush2.msra.mxu0 0.0
        %620 = vmatprep.subr.mxu0 0.0
        %621 = vmatpush2.msra.mxu0 0.0
        %622 = vmatprep.subr.mxu0 0.0
        %623 = vmatpush2.msra.mxu0 0.0
        %624 = vmatprep.subr.mxu0 0.0
        %625 = vmatpush2.msra.mxu0 0.0
        %626 = vmatprep.subr.mxu0 0.0
        %627 = vmatpush2.msra.mxu0 0.0
        %628 = vmatprep.subr.mxu0 0.0
        %629 = vmatpush2.msra.mxu0 0.0
        %630 = vmatprep.subr.mxu0 0.0
        %631 = vmatpush2.msra.mxu0 0.0
        %632 = vmatprep.subr.mxu0 0.0
        %633 = vmatpush2.msra.mxu0 0.0
        %634 = vmatprep.subr.mxu0 0.0
        %635 = vmatpush2.msra.mxu0 0.0
        %636 = vmatprep.subr.mxu0 0.0
        %637 = vmatpush2.msra.mxu0 0.0
        %638 = vmatprep.subr.mxu0 0.0
        %639 = vmatpush2.msra.mxu0 0.0
        %640 = vmatprep.subr.mxu0 0.0
        %641 = vmatpush2.msra.mxu0 0.0
        %642 = vmatprep.subr.mxu0 0.0
        %643 = vmatpush2.msra.mxu0 0.0
        %644 = vmatprep.subr.mxu0 0.0
        %645 = vmatpush2.msra.mxu0 0.0
        %646 = vmatprep.subr.mxu0 0.0
        %647 = vmatpush2.msra.mxu0 0.0
        %648 = vmatprep.mubr.f32.mxu0 0.0
        %649 = vmatmul.mubr.f32.gmra.mxu0 %v582
        %v650 = vpop.f32.mrf.mxu0
        %v651 = vadd.f32 %v578, %v650
        %v652 = vpop.f32.mrf.mxu0
        %v653 = vadd.f32 %v578, %v652
        %654 = vdwg.mxu0
        %655 = vmatprep.subr.mxu0 0.0
        %656 = vmatpush1.msra.mxu0 0.0
        %657 = vmatprep.subr.mxu0 0.0
        %658 = vmatpush1.msra.mxu0 0.0
        %659 = vmatprep.subr.mxu0 0.0
        %660 = vmatpush1.msra.mxu0 0.0
        %661 = vmatprep.subr.mxu0 0.0
        %662 = vmatpush1.msra.mxu0 0.0
        %663 = vmatprep.subr.mxu0 0.0
        %664 = vmatpush1.msra.mxu0 0.0
        %665 = vmatprep.subr.mxu0 0.0
        %666 = vmatpush1.msra.mxu0 0.0
        %667 = vmatprep.subr.mxu0 0.0
        %668 = vmatpush1.msra.mxu0 0.0
        %669 = vmatprep.subr.mxu0 0.0
        %670 = vmatpush1.msra.mxu0 %v573
        %671 = vmatprep.subr.mxu0 0.0
        %672 = vmatpush1.msra.mxu0 %v570
        %673 = vmatprep.subr.mxu0 0.0
        %674 = vmatpush1.msra.mxu0 %v567
        %675 = vmatprep.subr.mxu0 0.0
        %676 = vmatpush1.msra.mxu0 %v564
        %677 = vmatprep.subr.mxu0 0.0
        %678 = vmatpush1.msra.mxu0 %v561
        %679 = vmatprep.subr.mxu0 0.0
        %680 = vmatpush1.msra.mxu0 %v558
        %681 = vmatprep.subr.mxu0 0.0
        %682 = vmatpush1.msra.mxu0 %v555
        %683 = vmatprep.subr.mxu0 0.0
        %684 = vmatpush1.msra.mxu0 %v552
        %685 = vmatprep.subr.mxu0 0.0
        %686 = vmatpush1.msra.mxu0 %v549
        %687 = vmatprep.subr.mxu0 0.0
        %688 = vmatpush2.msra.mxu0 0.0
        %689 = vmatprep.subr.mxu0 0.0
        %690 = vmatpush2.msra.mxu0 0.0
        %691 = vmatprep.subr.mxu0 0.0
        %692 = vmatpush2.msra.mxu0 0.0
        %693 = vmatprep.subr.mxu0 0.0
        %694 = vmatpush2.msra.mxu0 0.0
        %695 = vmatprep.subr.mxu0 0.0
        %696 = vmatpush2.msra.mxu0 0.0
        %697 = vmatprep.subr.mxu0 0.0
        %698 = vmatpush2.msra.mxu0 0.0
        %699 = vmatprep.subr.mxu0 0.0
        %700 = vmatpush2.msra.mxu0 0.0
        %701 = vmatprep.subr.mxu0 0.0
        %702 = vmatpush2.msra.mxu0 0.0
        %703 = vmatprep.subr.mxu0 0.0
        %704 = vmatpush2.msra.mxu0 0.0
        %705 = vmatprep.subr.mxu0 0.0
        %706 = vmatpush2.msra.mxu0 0.0
        %707 = vmatprep.subr.mxu0 0.0
        %708 = vmatpush2.msra.mxu0 0.0
        %709 = vmatprep.subr.mxu0 0.0
        %710 = vmatpush2.msra.mxu0 0.0
        %711 = vmatprep.subr.mxu0 0.0
        %712 = vmatpush2.msra.mxu0 0.0
        %713 = vmatprep.subr.mxu0 0.0
        %714 = vmatpush2.msra.mxu0 0.0
        %715 = vmatprep.subr.mxu0 0.0
        %716 = vmatpush2.msra.mxu0 0.0
        %717 = vmatprep.subr.mxu0 0.0
        %718 = vmatpush2.msra.mxu0 0.0
        %719 = vmatprep.mubr.f32.mxu0 0.0
        %720 = vmatmul.mubr.f32.gmra.mxu0 %v582
        %v721 = vpop.f32.mrf.mxu0
        %v722 = vadd.f32 %v578, %v721
        %v723 = vpop.f32.mrf.mxu0
        %724 = vdwg.mxu0
        %725 = vst [vmem:[%s311] sm:$0xff] %v651
        %726 = vst [vmem:[%s311 + $0x8] sm:$0xff] %v653
        %727 = vst [vmem:[%s311 + $0x10] sm:$0xff] %v722
        %s728 = sand.u32 %s165, 1
        %s729 = scalar_lea.sflag [#allocation6], %s728
        %s730 = sand.u32 %s165, 1
        %s731 = smul.addr %s730, 24
        %s732 = scalar_lea.vmem [#allocation9], %s731
        // Predicated region
        $region45: #{tpu_custom_call.1} parent=35 // pred_check
          %p733 = pneg %p175
        $region46: #{tpu_custom_call.1} parent=35 // pred_check_branch
          %735 = sbr.rel (%p733) target = $region48
        $region47: #{tpu_custom_call.1} parent=35 // pred_region
          %s736 = smul.u32 3, %s31
          %s738 = ssub.s32 384, 384
          %739 = vsyncadd %s729, %s738
          %s740 = smul.addr %s30, 3
          %s741 = sadd.s32 %s736, %s740
          %s742 = smul.addr %s29, 3
          %s743 = sadd.s32 %s741, %s742
          %s744 = smul.addr %s743, 128
          %s745 = scalar_lea.hbm %s4, %s744
          %s747 = sshll.u32 %s732, 4
          %s748 = int_to_ptr.vmem [resolvable:$true] %s747
          %750 = dma.vmem_to_hbm [thread:$0]  %s748, 384, %s745, %s729
        $region48: #{tpu_custom_call.1} parent=35 // pred_fallthru
          _
      $region36: #{tpu_custom_call.1} parent=5 // pred_fallthru
        _
      %p751 = scmp.le.s32.totalorder 2, %s19
      // Predicated region
      $region49: #{tpu_custom_call.1} parent=5 // pred_check
        %p752 = pneg %p751
      $region50: #{tpu_custom_call.1} parent=5 // pred_check_branch
        %754 = sbr.rel (%p752) target = $region52
      $region51: #{tpu_custom_call.1} parent=5 // pred_region
        %s755 = ssub.s32 %s19, 2
        // Predicated region
        $region53: #{tpu_custom_call.1} parent=51 // pred_check
          %p756 = pneg %p181
        $region54: #{tpu_custom_call.1} parent=51 // pred_check_branch
          %758 = sbr.rel (%p756) target = $region56
        $region55: #{tpu_custom_call.1} parent=51 // pred_region
          %s759 = sand.u32 %s166, 1
          %s760 = scalar_lea.sflag [#allocation6], %s759
          %s761 = sand.u32 %s166, 1
          %s762 = smul.addr %s761, 24
          %s763 = scalar_lea.vmem [#allocation9], %s762
          %764 = dma.done %s760, 384
        $region56: #{tpu_custom_call.1} parent=51 // pred_fallthru
          _
      $region52: #{tpu_custom_call.1} parent=5 // pred_fallthru
        _
    $region6: #{tpu_custom_call.1} parent=1 // loop_footer
      %s23 = sadd.s32 1, %s19
    $region7: #{tpu_custom_call.1} parent=1 // loop_footer_branch
      %18 = sbr.rel target = $region3
    $region8: #{tpu_custom_call.1} parent=1 // loop_exit
      _
    %765 = vsyncpa [#allocation5], 1
    %s766 = scalar_lea.sflag [#allocation5], 1
    %767 = vsyncpa %s766, 1
    %768 = vsyncpa [#allocation8], 1
    %s769 = scalar_lea.sflag [#allocation8], 1
    %770 = vsyncpa %s769, 1
    %771 = vsyncpa [#allocation6], 1
    %s772 = scalar_lea.sflag [#allocation6], 1
    %773 = vsyncpa %s772, 1

</llo_original>
